<compile_context>
chip_gen: v5e
topology: v5e:2x2
jax: 0.10.0
libtpu: 0.0.40
codegen_flags: <defaults>
</compile_context>

<pallas_src>
import functools
import math

import jax
import jax.numpy as jnp
from jax import lax
from jax.experimental import pallas as pl
from jax.experimental.pallas import tpu as pltpu


def _window_attention_kernel(
    qx_ref, kvx_ref,
    wq_ref, bqp_ref, wkv_ref, bkv_ref, wpk_ref, bpd_ref,
    out_ref,
    *, num_heads, head_dim, q_len, kv_len, rep, scale,
):
    C = num_heads * head_dim
    H = num_heads
    hd = head_dim
    R_q = qx_ref.shape[0]                  # B_blk_q * q_len rows of C lanes
    R_kv = kvx_ref.shape[0]                # B_blk_kv * kv_len rows of C lanes
    B_q_blk = R_q // q_len
    B_kv_blk = R_kv // kv_len

    # ---- projections (bf16 MXU operands, f32 accumulation) ------------------
    # pos folded into the q bias:  (x + pos) Wq + bq  ==  x Wq + (pos Wq + bq)
    q = jnp.dot(qx_ref[...].astype(jnp.bfloat16), wq_ref[...],
                preferred_element_type=jnp.float32)
    q = q.reshape(B_q_blk, q_len, C) + bqp_ref[...][None, :, :]

    kv = jnp.dot(kvx_ref[...].astype(jnp.bfloat16), wkv_ref[...],
                 preferred_element_type=jnp.float32) + bkv_ref[...]
    kv = kv.reshape(B_kv_blk, kv_len, 2 * C)
    if rep > 1:
        # virtual torch.tile: replicate the (VMEM-resident) projected kv block;
        # kv batch r pairs with q batch r (local index r % B_kv_blk).
        kv = jnp.concatenate([kv] * rep, axis=0)           # (B_q_blk, kv_len, 2C)

    k = kv[:, :, :C]
    v = kv[:, :, C:]

    # ---- batched multi-head attention ---------------------------------------
    # head-major batching (combined index = h*B + b) via lane slices only.
    def split_heads(t):
        return jnp.concatenate(
            [t[:, :, h * hd:(h + 1) * hd] for h in range(H)], axis=0)

    qh = split_heads(q)                    # (H*B, q_len, hd)
    kh = split_heads(k)                    # (H*B, kv_len, hd)
    vh = split_heads(v)                    # (H*B, kv_len, hd)

    eps2 = 1e-24                           # (F.normalize eps=1e-12)**2, f32-safe
    qn = qh * (lax.rsqrt(jnp.maximum(jnp.sum(qh * qh, -1, keepdims=True), eps2))
               * scale)                    # fold attention scale into q
    kn = kh * lax.rsqrt(jnp.maximum(jnp.sum(kh * kh, -1, keepdims=True), eps2))

    s = jnp.einsum("bqd,bkd->bqk",
                   qn.astype(jnp.bfloat16), kn.astype(jnp.bfloat16),
                   preferred_element_type=jnp.float32)     # (H*B, q_len, kv_len)

    # numerically-stable softmax in f32; denominator reciprocal on the EUP
    m = jnp.max(s, axis=-1, keepdims=True)
    e = jnp.exp(s - m)
    p = e * pl.reciprocal(jnp.sum(e, axis=-1, keepdims=True), approx=True)
    # attn_drop / proj_drop are identity (p=0.0 / eval mode)

    o = jnp.einsum("bqk,bkd->bqd",
                   p.astype(jnp.bfloat16), vh.astype(jnp.bfloat16),
                   preferred_element_type=jnp.float32)     # (H*B, q_len, hd)

    # ---- merge heads, go lane-dense, fused output projection ----------------
    # heads back onto their disjoint lane slices: (B, q_len, C)
    o = jnp.concatenate([o[h * B_q_blk:(h + 1) * B_q_blk] for h in range(H)],
                        axis=-1)
    # flatten (q_len, C) onto the lane axis -> dense (B, q_len*C) rows
    o = jnp.concatenate([o[:, l, :] for l in range(q_len)], axis=-1)
    # single projection against kron(I_qlen, Wp): fuses all heads / all window
    # positions into one deep contraction and yields the lane-dense layout the
    # (unmasked) output store wants.  Zero blocks contribute exact zeros.
    out = jnp.dot(o.astype(jnp.bfloat16), wpk_ref[...],
                  preferred_element_type=jnp.float32) + bpd_ref[...]
    out_ref[...] = out.astype(out_ref.dtype)


def _num_tensorcores_per_chip():
    # Best-effort: v7x (and v4/v5p megacore) expose 2 TensorCores that share the
    # "parallel" grid axes; v5e/v6e have 1.  A wrong answer only affects the
    # block-size heuristic, never correctness.
    try:
        kind = jax.devices()[0].device_kind.lower()
    except Exception:
        return 1
    for tag in ("v7", "7x", "v4", "v5p"):
        if tag in kind:
            return 2
    return 1


def _choose_blocking(B_q, B_kv, q_len, kv_len, *, num_heads, num_cores):
    """Pick (B_blk_q, B_blk_kv, rep, kv_blocks, n_inner).

    Block constraint for the row-flattened inputs / lane-dense output (2-D
    arrays): the block's second-to-last (batch/row) dim must be a multiple of 8
    or span the full array dim, so B_blk_q is B_q itself or a multiple of 8
    dividing B_q.  kv is either fully resident (B_blk_q multiple of B_kv ->
    replicate in VMEM by `rep`) or blocked at the same batch size with a 2-D
    grid that keeps the kv block resident across the inner axis.
    """
    cands = {B_q}
    d = 8
    while d < B_q:
        if B_q % d == 0:
            cands.add(d)
        d += 8

    options = []
    for bq in sorted(cands):
        if bq % B_kv == 0:
            bkv, rep = B_kv, bq // B_kv
        elif B_kv % bq == 0 and bq % 8 == 0:
            bkv, rep = bq, 1
        else:
            continue
        # rough per-step VMEM proxy: the batched per-head f32 tensors dominate;
        # every row is lane-padded to 128 lanes (512 B) when C < 128.
        vmem_est = 8 * num_heads * bq * max(q_len, kv_len) * 512
        options.append((bq, bkv, rep, vmem_est))

    budget = 16 * 1024 * 1024              # stay well inside scoped VMEM, all gens
    fitting = [o for o in options if o[3] <= budget]
    if not fitting:
        fitting = [min(options, key=lambda o: o[3])]
    if num_cores > 1:
        # 2-TC chips: keep >= num_cores grid steps when possible so both cores
        # get work; on 1-TC chips just take the largest block (fewest steps).
        multi = [o for o in fitting if (B_q // o[0]) >= num_cores]
        if multi:
            fitting = multi
    bq, bkv, rep, _ = max(fitting, key=lambda o: o[0])
    kv_blocks = B_kv // bkv
    n_inner = (B_q // bq) // kv_blocks
    return bq, bkv, rep, kv_blocks, n_inner


def window_attention_pallas(qx, kvx, params, *, num_heads):
    """qx: (B_q, q_len, C), kvx: (B_kv, kv_len, C). No HBM tiling of kvx."""
    B_q, q_len, C = qx.shape
    B_kv, kv_len, _ = kvx.shape
    assert B_q % B_kv == 0, "q batch must be divisible by kv batch"
    head_dim = C // num_heads
    assert head_dim * num_heads == C
    scale = 1.0 / math.sqrt(C)
    LC = q_len * C

    num_cores = _num_tensorcores_per_chip()
    B_blk_q, B_blk_kv, rep, kv_blocks, n_inner = _choose_blocking(
        B_q, B_kv, q_len, kv_len, num_heads=num_heads, num_cores=num_cores)
    assert rep * B_blk_kv == B_blk_q and kv_blocks * B_blk_kv == B_kv

    # Row-flattened inputs (free, row-major-preserving reshapes outside the
    # kernel): every block row is a contiguous C-vector, no in-kernel relayout.
    qx_rows = qx.reshape(B_q * q_len, C)
    kvx_rows = kvx.reshape(B_kv * kv_len, C)

    f32 = jnp.float32
    wq_f = params["wq"].astype(f32)
    # pos folded into the q bias (exact identity): (q_len, C)
    bqp = params["pos"].astype(f32) @ wq_f + params["bq"].astype(f32)
    wq = wq_f.astype(jnp.bfloat16)
    wkv = params["wkv"].astype(jnp.bfloat16)
    bkv = params["bkv"].reshape(1, 2 * C).astype(f32)
    # Block-diagonal output projection kron(I_qlen, Wp): one deep contraction in
    # the lane-dense (B, q_len*C) domain.  (For C >= 128 a plain per-row Wp
    # epilogue would be preferable; here C=32 so dense lanes are the win.)
    wp_kron = jnp.kron(jnp.eye(q_len, dtype=f32),
                       params["wp"].astype(f32)).astype(jnp.bfloat16)
    bp_dense = jnp.tile(params["bp"].astype(f32).reshape(1, C), (1, q_len))

    kernel = functools.partial(
        _window_attention_kernel,
        num_heads=num_heads, head_dim=head_dim,
        q_len=q_len, kv_len=kv_len, rep=rep, scale=scale)

    def rep_spec(shape):      # grid-invariant (resident) operand
        return pl.BlockSpec(shape, lambda *_: (0,) * len(shape))

    # 2-D grid: kv block outer, q tile inner (inner iterates fastest), so the kv
    # block index is constant across the inner axis and kvx is not re-DMA'd.
    grid = (kv_blocks, n_inner)

    out_dense = pl.pallas_call(
        kernel,
        out_shape=jax.ShapeDtypeStruct((B_q, LC), qx.dtype),
        grid=grid,
        in_specs=[
            pl.BlockSpec((B_blk_q * q_len, C),
                         lambda j, t: (j + t * kv_blocks, 0)),     # qx rows
            pl.BlockSpec((B_blk_kv * kv_len, C),
                         lambda j, t: (j, 0)),                     # kvx rows (resident)
            rep_spec((C, C)),            # wq
            rep_spec((q_len, C)),        # bqp  (= pos @ Wq + bq)
            rep_spec((C, 2 * C)),        # wkv
            rep_spec((1, 2 * C)),        # bkv
            rep_spec((LC, LC)),          # kron(I, Wp)
            rep_spec((1, LC)),           # tiled bp
        ],
        out_specs=pl.BlockSpec((B_blk_q, LC),
                               lambda j, t: (j + t * kv_blocks, 0)),
        compiler_params=pltpu.CompilerParams(
            dimension_semantics=("parallel", "parallel"),
            vmem_limit_bytes=32 * 1024 * 1024),
    )(qx_rows, kvx_rows, wq, bqp, wkv, bkv, wp_kron, bp_dense)

    return out_dense.reshape(B_q, q_len, C)


def window_attention_ref(qx, kvx, params, *, num_heads):
    """Pure-JAX f32 reference mirroring the PyTorch forward."""
    B_q, q_len, C = qx.shape
    B_kv, kv_len, _ = kvx.shape
    tile_num = B_q // B_kv
    kvx = jnp.tile(kvx, (tile_num, 1, 1))
    qx = qx + params["pos"][None]

    q = qx @ params["wq"] + params["bq"]
    kv = kvx @ params["wkv"] + params["bkv"]
    k, v = kv[..., :C], kv[..., C:]

    def split_heads(t):
        B, L, _ = t.shape
        return t.reshape(B, L, num_heads, C // num_heads).transpose(0, 2, 1, 3)

    q, k, v = split_heads(q), split_heads(k), split_heads(v)

    def l2n(t):
        return t / jnp.maximum(jnp.sqrt(jnp.sum(t * t, -1, keepdims=True)), 1e-12)

    attn = jnp.einsum("bhqd,bhkd->bhqk", l2n(q), l2n(k)) * (1.0 / math.sqrt(C))
    attn = jax.nn.softmax(attn, axis=-1)
    x = jnp.einsum("bhqk,bhkd->bhqd", attn, v)
    x = x.transpose(0, 2, 1, 3).reshape(B_q, q_len, C)
    return x @ params["wp"] + params["bp"]


def make_params(key, dim, q_len):
    """Deterministic synthetic parameters; Linear weights stored (in, out)."""
    ks = jax.random.split(key, 7)
    s = 0.1
    return {
        # pos is zero-init in the module; small random values so the pos path
        # is actually exercised (still deterministic, synthetic).
        "pos": jax.random.normal(ks[0], (q_len, dim), jnp.float32) * 0.02,
        "wq": jax.random.normal(ks[1], (dim, dim), jnp.float32) * s,
        "bq": jax.random.normal(ks[2], (dim,), jnp.float32) * s,
        "wkv": jax.random.normal(ks[3], (dim, 2 * dim), jnp.float32) * s,
        "bkv": jax.random.normal(ks[4], (2 * dim,), jnp.float32) * s,
        "wp": jax.random.normal(ks[5], (dim, dim), jnp.float32) * s,
        "bp": jax.random.normal(ks[6], (dim,), jnp.float32) * s,
    }


if __name__ == "__main__":
    # Small configuration consistent with the module:
    #   dim=32, window_size=(4,2) -> q_len=8, num_heads=2, kv_len=8,
    #   B_kv=2, B_q=4 (tile_num=2).
    dim = 32
    window_size = (4, 2)
    q_len = window_size[0] * window_size[1]
    kv_len = 8
    num_heads = 2
    B_kv, B_q = 2, 4

    key = jax.random.PRNGKey(0)
    k_q, k_kv, k_p = jax.random.split(key, 3)
    qx = jax.random.normal(k_q, (B_q, q_len, dim), jnp.float32)
    kvx = jax.random.normal(k_kv, (B_kv, kv_len, dim), jnp.float32)
    params = make_params(k_p, dim, q_len)

    out = window_attention_pallas(qx, kvx, params, num_heads=num_heads)
    out = jax.block_until_ready(out)

    ref = window_attention_ref(qx, kvx, params, num_heads=num_heads)
    assert out.shape == (B_q, q_len, dim)
    # bf16 MXU operands + approximate EUP reciprocal in the softmax denominator
    # => loosened tolerance vs the all-f32 reference.
    assert jnp.allclose(out, ref, atol=5e-2, rtol=5e-2), "mismatch vs reference"

    print("KERNEL_OK")
</pallas_src>

<mosaic_0001>
module attributes {stable_mosaic.version = 11 : i64} {
  func.func @_window_attention_kernel(%arg0: i32, %arg1: i32, %arg2: memref<32x32xf32, #tpu.memory_space<vmem>>, %arg3: memref<16x32xf32, #tpu.memory_space<vmem>>, %arg4: memref<32x32xbf16, #tpu.memory_space<vmem>>, %arg5: memref<8x32xf32, #tpu.memory_space<vmem>>, %arg6: memref<32x64xbf16, #tpu.memory_space<vmem>>, %arg7: memref<1x64xf32, #tpu.memory_space<vmem>>, %arg8: memref<256x256xbf16, #tpu.memory_space<vmem>>, %arg9: memref<1x256xf32, #tpu.memory_space<vmem>>, %arg10: memref<4x256xf32, #tpu.memory_space<vmem>>) attributes {dimension_semantics = [#tpu.dimension_semantics<parallel>, #tpu.dimension_semantics<parallel>], iteration_bounds = array<i64: 1, 1>, scalar_prefetch = 0 : i64, scratch_operands = 0 : i64, tpu.core_type = #tpu.core_type<tc>, window_params = [{transform_indices = @transform_0, window_bounds = array<i64: 32, 32>}, {transform_indices = @transform_1, window_bounds = array<i64: 16, 32>}, {pipeline_mode = #tpu.pipeline_mode<synchronous>, transform_indices = @transform_2, window_bounds = array<i64: 32, 32>}, {pipeline_mode = #tpu.pipeline_mode<synchronous>, transform_indices = @transform_3, window_bounds = array<i64: 8, 32>}, {pipeline_mode = #tpu.pipeline_mode<synchronous>, transform_indices = @transform_4, window_bounds = array<i64: 32, 64>}, {pipeline_mode = #tpu.pipeline_mode<synchronous>, transform_indices = @transform_5, window_bounds = array<i64: 1, 64>}, {pipeline_mode = #tpu.pipeline_mode<synchronous>, transform_indices = @transform_6, window_bounds = array<i64: 256, 256>}, {pipeline_mode = #tpu.pipeline_mode<synchronous>, transform_indices = @transform_7, window_bounds = array<i64: 1, 256>}, {transform_indices = @transform_8, window_bounds = array<i64: 4, 256>}]} {
    %c0 = arith.constant 0 : index
    %c0_0 = arith.constant 0 : index
    %0 = vector.load %arg2[%c0, %c0_0] : memref<32x32xf32, #tpu.memory_space<vmem>>, vector<32x32xf32>
    %1 = arith.truncf %0 : vector<32x32xf32> to vector<32x32xbf16>
    %c0_1 = arith.constant 0 : index
    %c0_2 = arith.constant 0 : index
    %2 = vector.load %arg4[%c0_1, %c0_2] : memref<32x32xbf16, #tpu.memory_space<vmem>>, vector<32x32xbf16>
    %cst = arith.constant dense<0.000000e+00> : vector<32x32xf32>
    %3 = tpu.matmul %1, %2, %cst {dimension_numbers = #tpu.dot_dimension_numbers<[1], [0], [0], [1], [0, 0, 1, 1], [], []>} : vector<32x32xbf16>, vector<32x32xbf16>, vector<32x32xf32> -> vector<32x32xf32>
    %4 = vector.shape_cast %3 : vector<32x32xf32> to vector<4x8x32xf32>
    %c0_3 = arith.constant 0 : index
    %c0_4 = arith.constant 0 : index
    %5 = vector.load %arg5[%c0_3, %c0_4] : memref<8x32xf32, #tpu.memory_space<vmem>>, vector<8x32xf32>
    %6 = vector.shape_cast %5 : vector<8x32xf32> to vector<1x8x32xf32>
    %7 = vector.broadcast %6 : vector<1x8x32xf32> to vector<4x8x32xf32>
    %8 = arith.addf %4, %7 : vector<4x8x32xf32>
    %c0_5 = arith.constant 0 : index
    %c0_6 = arith.constant 0 : index
    %9 = vector.load %arg3[%c0_5, %c0_6] : memref<16x32xf32, #tpu.memory_space<vmem>>, vector<16x32xf32>
    %10 = arith.truncf %9 : vector<16x32xf32> to vector<16x32xbf16>
    %c0_7 = arith.constant 0 : index
    %c0_8 = arith.constant 0 : index
    %11 = vector.load %arg6[%c0_7, %c0_8] : memref<32x64xbf16, #tpu.memory_space<vmem>>, vector<32x64xbf16>
    %cst_9 = arith.constant dense<0.000000e+00> : vector<16x64xf32>
    %12 = tpu.matmul %10, %11, %cst_9 {dimension_numbers = #tpu.dot_dimension_numbers<[1], [0], [0], [1], [0, 0, 1, 1], [], []>} : vector<16x32xbf16>, vector<32x64xbf16>, vector<16x64xf32> -> vector<16x64xf32>
    %c0_10 = arith.constant 0 : index
    %c0_11 = arith.constant 0 : index
    %13 = vector.load %arg7[%c0_10, %c0_11] : memref<1x64xf32, #tpu.memory_space<vmem>>, vector<1x64xf32>
    %14 = vector.broadcast %13 : vector<1x64xf32> to vector<16x64xf32>
    %15 = arith.addf %12, %14 : vector<16x64xf32>
    %16 = vector.shape_cast %15 : vector<16x64xf32> to vector<2x8x64xf32>
    %17 = tpu.concatenate %16, %16 in 0 : vector<2x8x64xf32>, vector<2x8x64xf32> -> vector<4x8x64xf32>
    %18 = vector.extract_strided_slice %17 {offsets = [0, 0, 0], sizes = [4, 8, 32], strides = [1, 1, 1]} : vector<4x8x64xf32> to vector<4x8x32xf32>
    %19 = vector.extract_strided_slice %17 {offsets = [0, 0, 32], sizes = [4, 8, 32], strides = [1, 1, 1]} : vector<4x8x64xf32> to vector<4x8x32xf32>
    %20 = vector.extract_strided_slice %8 {offsets = [0, 0, 0], sizes = [4, 8, 16], strides = [1, 1, 1]} : vector<4x8x32xf32> to vector<4x8x16xf32>
    %21 = vector.extract_strided_slice %8 {offsets = [0, 0, 16], sizes = [4, 8, 16], strides = [1, 1, 1]} : vector<4x8x32xf32> to vector<4x8x16xf32>
    %22 = tpu.concatenate %20, %21 in 0 : vector<4x8x16xf32>, vector<4x8x16xf32> -> vector<8x8x16xf32>
    %23 = vector.extract_strided_slice %18 {offsets = [0, 0, 0], sizes = [4, 8, 16], strides = [1, 1, 1]} : vector<4x8x32xf32> to vector<4x8x16xf32>
    %24 = vector.extract_strided_slice %18 {offsets = [0, 0, 16], sizes = [4, 8, 16], strides = [1, 1, 1]} : vector<4x8x32xf32> to vector<4x8x16xf32>
    %25 = tpu.concatenate %23, %24 in 0 : vector<4x8x16xf32>, vector<4x8x16xf32> -> vector<8x8x16xf32>
    %26 = vector.extract_strided_slice %19 {offsets = [0, 0, 0], sizes = [4, 8, 16], strides = [1, 1, 1]} : vector<4x8x32xf32> to vector<4x8x16xf32>
    %27 = vector.extract_strided_slice %19 {offsets = [0, 0, 16], sizes = [4, 8, 16], strides = [1, 1, 1]} : vector<4x8x32xf32> to vector<4x8x16xf32>
    %28 = tpu.concatenate %26, %27 in 0 : vector<4x8x16xf32>, vector<4x8x16xf32> -> vector<8x8x16xf32>
    %29 = arith.mulf %22, %22 : vector<8x8x16xf32>
    %cst_12 = arith.constant dense<0.000000e+00> : vector<8x8xf32>
    %30 = vector.multi_reduction <add>, %29, %cst_12 [2] : vector<8x8x16xf32> to vector<8x8xf32>
    %31 = vector.shape_cast %30 : vector<8x8xf32> to vector<8x8x1xf32>
    %cst_13 = arith.constant 1.000000e-24 : f32
    %32 = vector.broadcast %cst_13 : f32 to vector<8x8x1xf32>
    %33 = arith.maximumf %31, %32 : vector<8x8x1xf32>
    %34 = math.rsqrt %33 : vector<8x8x1xf32>
    %cst_14 = arith.constant 0.176776692 : f32
    %35 = vector.broadcast %cst_14 : f32 to vector<8x8x1xf32>
    %36 = arith.mulf %34, %35 : vector<8x8x1xf32>
    %37 = vector.broadcast %36 : vector<8x8x1xf32> to vector<8x8x16xf32>
    %38 = arith.mulf %22, %37 : vector<8x8x16xf32>
    %39 = arith.mulf %25, %25 : vector<8x8x16xf32>
    %cst_15 = arith.constant dense<0.000000e+00> : vector<8x8xf32>
    %40 = vector.multi_reduction <add>, %39, %cst_15 [2] : vector<8x8x16xf32> to vector<8x8xf32>
    %41 = vector.shape_cast %40 : vector<8x8xf32> to vector<8x8x1xf32>
    %cst_16 = arith.constant 1.000000e-24 : f32
    %42 = vector.broadcast %cst_16 : f32 to vector<8x8x1xf32>
    %43 = arith.maximumf %41, %42 : vector<8x8x1xf32>
    %44 = math.rsqrt %43 : vector<8x8x1xf32>
    %45 = vector.broadcast %44 : vector<8x8x1xf32> to vector<8x8x16xf32>
    %46 = arith.mulf %25, %45 : vector<8x8x16xf32>
    %47 = arith.truncf %38 : vector<8x8x16xf32> to vector<8x8x16xbf16>
    %48 = arith.truncf %46 : vector<8x8x16xf32> to vector<8x8x16xbf16>
    "tpu.trace_start"() <{level = 10 : i32, message = "bqd,bkd->bqk"}> : () -> ()
    %cst_17 = arith.constant dense<0.000000e+00> : vector<8x8x8xf32>
    %49 = tpu.matmul %47, %48, %cst_17 {dimension_numbers = #tpu.dot_dimension_numbers<[2], [2], [1], [1], [0, 0, 0, 1, 1, 1], [0], [0]>} : vector<8x8x16xbf16>, vector<8x8x16xbf16>, vector<8x8x8xf32> -> vector<8x8x8xf32>
    "tpu.trace_stop"() : () -> ()
    %cst_18 = arith.constant dense<0xFF800000> : vector<8x8xf32>
    %50 = vector.multi_reduction <maximumf>, %49, %cst_18 [2] : vector<8x8x8xf32> to vector<8x8xf32>
    %51 = vector.shape_cast %50 : vector<8x8xf32> to vector<8x8x1xf32>
    %52 = vector.broadcast %51 : vector<8x8x1xf32> to vector<8x8x8xf32>
    %53 = arith.subf %49, %52 : vector<8x8x8xf32>
    %54 = math.exp %53 : vector<8x8x8xf32>
    %cst_19 = arith.constant dense<0.000000e+00> : vector<8x8xf32>
    %55 = vector.multi_reduction <add>, %54, %cst_19 [2] : vector<8x8x8xf32> to vector<8x8xf32>
    %56 = vector.shape_cast %55 : vector<8x8xf32> to vector<8x8x1xf32>
    %57 = tpu.reciprocal %56 {approx = true} : vector<8x8x1xf32> -> vector<8x8x1xf32>
    %58 = vector.broadcast %57 : vector<8x8x1xf32> to vector<8x8x8xf32>
    %59 = arith.mulf %54, %58 : vector<8x8x8xf32>
    %60 = arith.truncf %59 : vector<8x8x8xf32> to vector<8x8x8xbf16>
    %61 = arith.truncf %28 : vector<8x8x16xf32> to vector<8x8x16xbf16>
    "tpu.trace_start"() <{level = 10 : i32, message = "bqk,bkd->bqd"}> : () -> ()
    %cst_20 = arith.constant dense<0.000000e+00> : vector<8x8x16xf32>
    %62 = tpu.matmul %60, %61, %cst_20 {dimension_numbers = #tpu.dot_dimension_numbers<[2], [1], [1], [2], [0, 0, 0, 1, 1, 2], [0], [0]>} : vector<8x8x8xbf16>, vector<8x8x16xbf16>, vector<8x8x16xf32> -> vector<8x8x16xf32>
    "tpu.trace_stop"() : () -> ()
    %63 = vector.extract_strided_slice %62 {offsets = [0, 0, 0], sizes = [4, 8, 16], strides = [1, 1, 1]} : vector<8x8x16xf32> to vector<4x8x16xf32>
    %64 = vector.extract_strided_slice %62 {offsets = [4, 0, 0], sizes = [4, 8, 16], strides = [1, 1, 1]} : vector<8x8x16xf32> to vector<4x8x16xf32>
    %65 = tpu.concatenate %63, %64 in 2 : vector<4x8x16xf32>, vector<4x8x16xf32> -> vector<4x8x32xf32>
    %66 = vector.extract_strided_slice %65 {offsets = [0, 0, 0], sizes = [4, 1, 32], strides = [1, 1, 1]} : vector<4x8x32xf32> to vector<4x1x32xf32>
    %67 = vector.shape_cast %66 : vector<4x1x32xf32> to vector<4x32xf32>
    %68 = vector.extract_strided_slice %65 {offsets = [0, 1, 0], sizes = [4, 1, 32], strides = [1, 1, 1]} : vector<4x8x32xf32> to vector<4x1x32xf32>
    %69 = vector.shape_cast %68 : vector<4x1x32xf32> to vector<4x32xf32>
    %70 = vector.extract_strided_slice %65 {offsets = [0, 2, 0], sizes = [4, 1, 32], strides = [1, 1, 1]} : vector<4x8x32xf32> to vector<4x1x32xf32>
    %71 = vector.shape_cast %70 : vector<4x1x32xf32> to vector<4x32xf32>
    %72 = vector.extract_strided_slice %65 {offsets = [0, 3, 0], sizes = [4, 1, 32], strides = [1, 1, 1]} : vector<4x8x32xf32> to vector<4x1x32xf32>
    %73 = vector.shape_cast %72 : vector<4x1x32xf32> to vector<4x32xf32>
    %74 = vector.extract_strided_slice %65 {offsets = [0, 4, 0], sizes = [4, 1, 32], strides = [1, 1, 1]} : vector<4x8x32xf32> to vector<4x1x32xf32>
    %75 = vector.shape_cast %74 : vector<4x1x32xf32> to vector<4x32xf32>
    %76 = vector.extract_strided_slice %65 {offsets = [0, 5, 0], sizes = [4, 1, 32], strides = [1, 1, 1]} : vector<4x8x32xf32> to vector<4x1x32xf32>
    %77 = vector.shape_cast %76 : vector<4x1x32xf32> to vector<4x32xf32>
    %78 = vector.extract_strided_slice %65 {offsets = [0, 6, 0], sizes = [4, 1, 32], strides = [1, 1, 1]} : vector<4x8x32xf32> to vector<4x1x32xf32>
    %79 = vector.shape_cast %78 : vector<4x1x32xf32> to vector<4x32xf32>
    %80 = vector.extract_strided_slice %65 {offsets = [0, 7, 0], sizes = [4, 1, 32], strides = [1, 1, 1]} : vector<4x8x32xf32> to vector<4x1x32xf32>
    %81 = vector.shape_cast %80 : vector<4x1x32xf32> to vector<4x32xf32>
    %82 = tpu.concatenate %67, %69, %71, %73, %75, %77, %79, %81 in 1 : vector<4x32xf32>, vector<4x32xf32>, vector<4x32xf32>, vector<4x32xf32>, vector<4x32xf32>, vector<4x32xf32>, vector<4x32xf32>, vector<4x32xf32> -> vector<4x256xf32>
    %83 = arith.truncf %82 : vector<4x256xf32> to vector<4x256xbf16>
    %c0_21 = arith.constant 0 : index
    %c0_22 = arith.constant 0 : index
    %84 = vector.load %arg8[%c0_21, %c0_22] : memref<256x256xbf16, #tpu.memory_space<vmem>>, vector<256x256xbf16>
    %cst_23 = arith.constant dense<0.000000e+00> : vector<4x256xf32>
    %85 = tpu.matmul %83, %84, %cst_23 {dimension_numbers = #tpu.dot_dimension_numbers<[1], [0], [0], [1], [0, 0, 1, 1], [], []>} : vector<4x256xbf16>, vector<256x256xbf16>, vector<4x256xf32> -> vector<4x256xf32>
    %c0_24 = arith.constant 0 : index
    %c0_25 = arith.constant 0 : index
    %86 = vector.load %arg9[%c0_24, %c0_25] : memref<1x256xf32, #tpu.memory_space<vmem>>, vector<1x256xf32>
    %87 = vector.broadcast %86 : vector<1x256xf32> to vector<4x256xf32>
    %88 = arith.addf %85, %87 : vector<4x256xf32>
    %c0_26 = arith.constant 0 : index
    %c0_27 = arith.constant 0 : index
    %89 = vector.load %arg10[%c0_26, %c0_27] : memref<4x256xf32, #tpu.memory_space<vmem>>, vector<4x256xf32>
    tpu.vector_store %arg10[%c0_26, %c0_27], %88 {strides = array<i32>} : memref<4x256xf32, #tpu.memory_space<vmem>>, vector<4x256xf32>,
    return
  }
  func.func @transform_0(%arg0: i32, %arg1: i32) -> (i32, i32) {
    %c1_i32 = arith.constant 1 : i32
    %0 = arith.muli %arg1, %c1_i32 : i32
    %1 = arith.addi %arg0, %0 : i32
    %c0_i32 = arith.constant 0 : i32
    %c0_i32_0 = arith.constant 0 : i32
    return %1, %c0_i32 : i32, i32
  }
  func.func @transform_1(%arg0: i32, %arg1: i32) -> (i32, i32) {
    %c0_i32 = arith.constant 0 : i32
    %c0_i32_0 = arith.constant 0 : i32
    return %arg0, %c0_i32 : i32, i32
  }
  func.func @transform_2(%arg0: i32, %arg1: i32) -> (i32, i32) {
    %c0_i32 = arith.constant 0 : i32
    %c0_i32_0 = arith.constant 0 : i32
    %c0_i32_1 = arith.constant 0 : i32
    return %c0_i32, %c0_i32_0 : i32, i32
  }
  func.func @transform_3(%arg0: i32, %arg1: i32) -> (i32, i32) {
    %c0_i32 = arith.constant 0 : i32
    %c0_i32_0 = arith.constant 0 : i32
    %c0_i32_1 = arith.constant 0 : i32
    return %c0_i32, %c0_i32_0 : i32, i32
  }
  func.func @transform_4(%arg0: i32, %arg1: i32) -> (i32, i32) {
    %c0_i32 = arith.constant 0 : i32
    %c0_i32_0 = arith.constant 0 : i32
    %c0_i32_1 = arith.constant 0 : i32
    return %c0_i32, %c0_i32_0 : i32, i32
  }
  func.func @transform_5(%arg0: i32, %arg1: i32) -> (i32, i32) {
    %c0_i32 = arith.constant 0 : i32
    %c0_i32_0 = arith.constant 0 : i32
    %c0_i32_1 = arith.constant 0 : i32
    return %c0_i32, %c0_i32_0 : i32, i32
  }
  func.func @transform_6(%arg0: i32, %arg1: i32) -> (i32, i32) {
    %c0_i32 = arith.constant 0 : i32
    %c0_i32_0 = arith.constant 0 : i32
    %c0_i32_1 = arith.constant 0 : i32
    return %c0_i32, %c0_i32_0 : i32, i32
  }
  func.func @transform_7(%arg0: i32, %arg1: i32) -> (i32, i32) {
    %c0_i32 = arith.constant 0 : i32
    %c0_i32_0 = arith.constant 0 : i32
    %c0_i32_1 = arith.constant 0 : i32
    return %c0_i32, %c0_i32_0 : i32, i32
  }
  func.func @transform_8(%arg0: i32, %arg1: i32) -> (i32, i32) {
    %c1_i32 = arith.constant 1 : i32
    %0 = arith.muli %arg1, %c1_i32 : i32
    %1 = arith.addi %arg0, %0 : i32
    %c0_i32 = arith.constant 0 : i32
    %c0_i32_0 = arith.constant 0 : i32
    return %1, %c0_i32 : i32, i32
  }
}

</mosaic_0001>

<llo_original>
// kernel: tpu_custom_call.1
$region0: #{tpu_custom_call.1}
  #allocation0 [shape = 'u32[]', space=smem, size = 0x4, offset = 0x4, fixed_abs, tag = 'smem constant byte address 0x4 - core index']
  #allocation1 [shape = 'u32[72,128]{1,0:T(1,128)}', space=vmem, size = 0x9000, scoped, tag = 'internal scratch']
  %s0 = inlined_call_operand.hbm [shape: f32[32,32], index: 0, kind: input, shape index: {}]
  %s1 = inlined_call_operand.hbm [shape: f32[16,32], index: 1, kind: input, shape index: {}]
  %s2 = inlined_call_operand.hbm [shape: bf16[32,32], index: 2, kind: input, shape index: {}]
  %s3 = inlined_call_operand.hbm [shape: f32[8,32], index: 3, kind: input, shape index: {}]
  %s4 = inlined_call_operand.hbm [shape: bf16[32,64], index: 4, kind: input, shape index: {}]
  %s5 = inlined_call_operand.vmem [shape: f32[1,64], index: 5, kind: input, shape index: {}]
  %s6 = inlined_call_operand.hbm [shape: bf16[256,256], index: 6, kind: input, shape index: {}]
  %s7 = inlined_call_operand.vmem [shape: f32[1,256], index: 7, kind: input, shape index: {}]
  %s8 = inlined_call_operand.hbm [shape: f32[4,256], index: 8, kind: output, shape index: {}]
  %s9 = sld [smem:[#allocation0]]
  $region66: #{tpu_custom_call.1} parent=0
    _
  %s11 = ssub.s32 1, %s9
  %s12 = scalar_select 0, %s11, %s9
  $region1: #{tpu_custom_call.1} parent=0
    #allocation2 [shape = 'u8[16384]{0}', space=vmem, size = 0x4000, scoped, tag = 'input window, operand 0, single buffered']
    #allocation3 [shape = 's32[1]{0}', space=sflag, size = 0x4, scoped, tag = 'scoped memory for tpu_custom_call.1']
    #allocation4 [shape = 's32[1]{0}', space=sflag, size = 0x4, scoped, tag = 'scoped memory for tpu_custom_call.1']
    #allocation5 [shape = 'u8[8192]{0}', space=vmem, size = 0x2000, scoped, tag = 'input window, operand 1, single buffered']
    #allocation6 [shape = 's32[1]{0}', space=sflag, size = 0x4, scoped, tag = 'scoped memory for tpu_custom_call.1']
    #allocation7 [shape = 'u8[8192]{0}', space=vmem, size = 0x2000, scoped, tag = 'input window, operand 2, single buffered']
    #allocation8 [shape = 'u8[4096]{0}', space=vmem, size = 0x1000, scoped, tag = 'input window, operand 3, single buffered']
    #allocation9 [shape = 's32[1]{0}', space=sflag, size = 0x4, scoped, tag = 'scoped memory for tpu_custom_call.1']
    #allocation10 [shape = 'u8[8192]{0}', space=vmem, size = 0x2000, scoped, tag = 'input window, operand 4, single buffered']
    #allocation11 [shape = 'u8[131072]{0}', space=vmem, size = 0x20000, scoped, tag = 'input window, operand 6, single buffered']
    #allocation12 [shape = 's32[1]{0}', space=sflag, size = 0x4, scoped, tag = 'scoped memory for tpu_custom_call.1']
    #allocation13 [shape = 'u8[4096]{0}', space=vmem, size = 0x1000, scoped, tag = 'output window, operand 0, single buffered']
    %13 = vsyncpa [#allocation3], 0
    %14 = vsyncpa [#allocation6], 0
    %15 = vsyncpa [#allocation9], 0
    %16 = vsyncpa [#allocation12], 0
    %17 = vsyncpa [#allocation4], 0
    // Predicated region
    $region2: #{tpu_custom_call.1} parent=1 // pred_check
      _
    $region3: #{tpu_custom_call.1} parent=1 // pred_check_branch
      %19 = sbr.rel (0) target = $region5
    $region4: #{tpu_custom_call.1} parent=1 // pred_region
      %s20 = sadd.s32 0, 0
      %s21 = smul.u32 4, %s20
      %23 = vsyncadd [#allocation3], 0
      %s24 = smul.addr %s21, 8
      %s25 = scalar_lea.hbm %s0, %s24
      %s26 = sshll.u32 %s25, 4
      %s27 = int_to_ptr.hbm [resolvable:$true] %s26
      %s28 = sshll.u32 [#allocation2], 4
      %s29 = int_to_ptr.vmem [resolvable:$true] %s28
      %34 = dma.hbm_to_vmem [thread:$0]  %s27, 512, %s29, [#allocation3], 128, 128, 8
    $region5: #{tpu_custom_call.1} parent=1 // pred_fallthru
      _
    // Predicated region
    $region6: #{tpu_custom_call.1} parent=1 // pred_check
      _
    $region7: #{tpu_custom_call.1} parent=1 // pred_check_branch
      %36 = sbr.rel (0) target = $region9
    $region8: #{tpu_custom_call.1} parent=1 // pred_region
      %38 = vsyncadd [#allocation6], 0
      %s39 = sshll.u32 %s1, 4
      %s40 = int_to_ptr.hbm [resolvable:$true] %s39
      %s41 = sshll.u32 [#allocation5], 4
      %s42 = int_to_ptr.vmem [resolvable:$true] %s41
      %47 = dma.hbm_to_vmem [thread:$0]  %s40, 256, %s42, [#allocation6], 128, 128, 8
    $region9: #{tpu_custom_call.1} parent=1 // pred_fallthru
      _
    // Predicated region
    $region10: #{tpu_custom_call.1} parent=1 // pred_check
      _
    $region11: #{tpu_custom_call.1} parent=1 // pred_check_branch
      %49 = sbr.rel (0) target = $region13
    $region12: #{tpu_custom_call.1} parent=1 // pred_region
      %51 = vsyncadd [#allocation6], 0
      %s52 = sshll.u32 %s2, 4
      %s53 = int_to_ptr.hbm [resolvable:$true] %s52
      %s54 = sshll.u32 [#allocation7], 4
      %s55 = int_to_ptr.vmem [resolvable:$true] %s54
      %60 = dma.hbm_to_vmem [thread:$0]  %s53, 256, %s55, [#allocation6], 64, 64, 4
    $region13: #{tpu_custom_call.1} parent=1 // pred_fallthru
      _
    // Predicated region
    $region14: #{tpu_custom_call.1} parent=1 // pred_check
      _
    $region15: #{tpu_custom_call.1} parent=1 // pred_check_branch
      %62 = sbr.rel (0) target = $region17
    $region16: #{tpu_custom_call.1} parent=1 // pred_region
      %64 = vsyncadd [#allocation9], 0
      %s66 = sshll.u32 %s3, 4
      %s67 = int_to_ptr.hbm [resolvable:$true] %s66
      %s68 = sshll.u32 [#allocation8], 4
      %s69 = int_to_ptr.vmem [resolvable:$true] %s68
      %71 = dma.hbm_to_vmem [thread:$0]  %s67, 128, %s69, [#allocation9]
    $region17: #{tpu_custom_call.1} parent=1 // pred_fallthru
      _
    // Predicated region
    $region18: #{tpu_custom_call.1} parent=1 // pred_check
      _
    $region19: #{tpu_custom_call.1} parent=1 // pred_check_branch
      %73 = sbr.rel (0) target = $region21
    $region20: #{tpu_custom_call.1} parent=1 // pred_region
      %75 = vsyncadd [#allocation9], 0
      %s76 = sshll.u32 %s4, 4
      %s77 = int_to_ptr.hbm [resolvable:$true] %s76
      %s78 = sshll.u32 [#allocation10], 4
      %s79 = int_to_ptr.vmem [resolvable:$true] %s78
      %84 = dma.hbm_to_vmem [thread:$0]  %s77, 256, %s79, [#allocation9], 64, 64, 4
    $region21: #{tpu_custom_call.1} parent=1 // pred_fallthru
      _
    // Predicated region
    $region22: #{tpu_custom_call.1} parent=1 // pred_check
      _
    $region23: #{tpu_custom_call.1} parent=1 // pred_check_branch
      %86 = sbr.rel (0) target = $region25
    $region24: #{tpu_custom_call.1} parent=1 // pred_region
      _
    $region25: #{tpu_custom_call.1} parent=1 // pred_fallthru
      _
    // Predicated region
    $region26: #{tpu_custom_call.1} parent=1 // pred_check
      _
    $region27: #{tpu_custom_call.1} parent=1 // pred_check_branch
      %88 = sbr.rel (0) target = $region29
    $region28: #{tpu_custom_call.1} parent=1 // pred_region
      %90 = vsyncadd [#allocation12], 0
      %s91 = sshll.u32 %s6, 4
      %s92 = int_to_ptr.hbm [resolvable:$true] %s91
      %s93 = sshll.u32 [#allocation11], 4
      %s94 = int_to_ptr.vmem [resolvable:$true] %s93
      %99 = dma.hbm_to_vmem [thread:$0]  %s92, 4096, %s94, [#allocation12], 128, 128, 8
    $region29: #{tpu_custom_call.1} parent=1 // pred_fallthru
      _
    // Predicated region
    $region30: #{tpu_custom_call.1} parent=1 // pred_check
      _
    $region31: #{tpu_custom_call.1} parent=1 // pred_check_branch
      %101 = sbr.rel (0) target = $region33
    $region32: #{tpu_custom_call.1} parent=1 // pred_region
      _
    $region33: #{tpu_custom_call.1} parent=1 // pred_fallthru
      _
    // Predicated region
    $region34: #{tpu_custom_call.1} parent=1 // pred_check
      _
    $region35: #{tpu_custom_call.1} parent=1 // pred_check_branch
      %103 = sbr.rel (0) target = $region37
    $region36: #{tpu_custom_call.1} parent=1 // pred_region
      %105 = dma.done [#allocation3], 512
    $region37: #{tpu_custom_call.1} parent=1 // pred_fallthru
      _
    // Predicated region
    $region38: #{tpu_custom_call.1} parent=1 // pred_check
      _
    $region39: #{tpu_custom_call.1} parent=1 // pred_check_branch
      %107 = sbr.rel (0) target = $region41
    $region40: #{tpu_custom_call.1} parent=1 // pred_region
      %109 = dma.done [#allocation6], 256
    $region41: #{tpu_custom_call.1} parent=1 // pred_fallthru
      _
    // Predicated region
    $region42: #{tpu_custom_call.1} parent=1 // pred_check
      _
    $region43: #{tpu_custom_call.1} parent=1 // pred_check_branch
      %111 = sbr.rel (0) target = $region45
    $region44: #{tpu_custom_call.1} parent=1 // pred_region
      %113 = dma.done [#allocation6], 256
    $region45: #{tpu_custom_call.1} parent=1 // pred_fallthru
      _
    // Predicated region
    $region46: #{tpu_custom_call.1} parent=1 // pred_check
      _
    $region47: #{tpu_custom_call.1} parent=1 // pred_check_branch
      %115 = sbr.rel (0) target = $region49
    $region48: #{tpu_custom_call.1} parent=1 // pred_region
      %117 = dma.done [#allocation9], 128
    $region49: #{tpu_custom_call.1} parent=1 // pred_fallthru
      _
    // Predicated region
    $region50: #{tpu_custom_call.1} parent=1 // pred_check
      _
    $region51: #{tpu_custom_call.1} parent=1 // pred_check_branch
      %119 = sbr.rel (0) target = $region53
    $region52: #{tpu_custom_call.1} parent=1 // pred_region
      %121 = dma.done [#allocation9], 256
    $region53: #{tpu_custom_call.1} parent=1 // pred_fallthru
      _
    // Predicated region
    $region54: #{tpu_custom_call.1} parent=1 // pred_check
      _
    $region55: #{tpu_custom_call.1} parent=1 // pred_check_branch
      %123 = sbr.rel (0) target = $region57
    $region56: #{tpu_custom_call.1} parent=1 // pred_region
      %125 = dma.done [#allocation12], 4096
    $region57: #{tpu_custom_call.1} parent=1 // pred_fallthru
      _
    %s126 = sadd.s32 0, 0
    %s127 = smul.u32 4, %s126
    %s128 = sadd.s32 0, 0
    %v130 = vld [vmem:[#allocation2] sm:$0xff]
    %v131 = vld [vmem:[#allocation2 + $0x8] sm:$0xff]
    %v132 = vld [vmem:[#allocation2 + $0x10] sm:$0xff]
    %v133 = vld [vmem:[#allocation2 + $0x18] sm:$0xff]
    %v134 = vpack.c.bf16 %v131, %v130
    %v135 = vpack.c.bf16 %v133, %v132
    %v136 = vld [vmem:[#allocation7] sm:$0xf]
    %v137 = vld [vmem:[#allocation7 + $0x4] sm:$0xf]
    %v138 = vld [vmem:[#allocation7 + $0x8] sm:$0xf]
    %v139 = vld [vmem:[#allocation7 + $0xc] sm:$0xf]
    %v144 = vunpack.c.l.b16 %v136
    %v145 = vunpack.c.l.b16 %v137
    %v146 = vunpack.c.l.b16 %v138
    %v147 = vunpack.c.l.b16 %v139
    %v148 = vpack.c.b16 %v145, %v144
    %v149 = vpack.c.b16 %v147, %v146
    %vm152 = vcmask 261120
    %v154 = vsel %vm152, %v134, 0
    %v157 = vsel %vm152, %v135, 0
    %159 = vmatpush.bf16.msra.mxu0 0
    %160 = vmatpush.bf16.msra.mxu0 0
    %161 = vmatpush.bf16.msra.mxu0 0
    %162 = vmatpush.bf16.msra.mxu0 0
    %163 = vmatpush.bf16.msra.mxu0 0
    %164 = vmatpush.bf16.msra.mxu0 0
    %165 = vmatpush.bf16.msra.mxu0 %v149
    %166 = vmatpush.bf16.msra.mxu0 %v148
    %167 = vmatmul.bf16.gmra.mxu0 %v154
    %v168 = vpop.f32.mrf.mxu0
    %v169 = vadd.f32 0.0, %v168
    %v170 = vpop.f32.mrf.mxu0
    %v171 = vadd.f32 0.0, %v170
    %172 = vmatmul.bf16.gmra.mxu0 %v157
    %v173 = vpop.f32.mrf.mxu0
    %v174 = vadd.f32 0.0, %v173
    %v175 = vpop.f32.mrf.mxu0
    %v176 = vadd.f32 0.0, %v175
    %177 = vdwg.mxu0
    %v178 = vld [vmem:[#allocation8] sm:$0xff]
    %v179 = vadd.f32 %v169, %v178
    %v180 = vadd.f32 %v171, %v178
    %v181 = vadd.f32 %v174, %v178
    %v182 = vadd.f32 %v176, %v178
    %v183 = vld [vmem:[#allocation5] sm:$0xff]
    %v184 = vld [vmem:[#allocation5 + $0x8] sm:$0xff]
    %v185 = vpack.c.bf16 %v184, %v183
    %v186 = vld [vmem:[#allocation10] sm:$0xf]
    %v187 = vld [vmem:[#allocation10 + $0x4] sm:$0xf]
    %v188 = vld [vmem:[#allocation10 + $0x8] sm:$0xf]
    %v189 = vld [vmem:[#allocation10 + $0xc] sm:$0xf]
    %v190 = vld [vmem:[%s5] sm:$0x1]
    %v192 = vperm.slane %v190, 0
    %v198 = vunpack.c.l.b16 %v186
    %v199 = vunpack.c.l.b16 %v187
    %v200 = vunpack.c.l.b16 %v188
    %v201 = vunpack.c.l.b16 %v189
    %v202 = vpack.c.b16 %v199, %v198
    %v203 = vpack.c.b16 %v201, %v200
    %v207 = vsel %vm152, %v185, 0
    %209 = vmatpush.bf16.msra.mxu0 0
    %210 = vmatpush.bf16.msra.mxu0 0
    %211 = vmatpush.bf16.msra.mxu0 0
    %212 = vmatpush.bf16.msra.mxu0 0
    %213 = vmatpush.bf16.msra.mxu0 0
    %214 = vmatpush.bf16.msra.mxu0 0
    %215 = vmatpush.bf16.msra.mxu0 %v203
    %216 = vmatpush.bf16.msra.mxu0 %v202
    %217 = vmatmul.bf16.gmra.mxu0 %v207
    %v218 = vpop.f32.mrf.mxu0
    %v219 = vadd.f32 %v192, %v218
    %v220 = vpop.f32.mrf.mxu0
    %v221 = vadd.f32 %v192, %v220
    %222 = vdwg.mxu0
    %227 = vrot.lane.b32.xlu0 %v179, 112
    %v228 = vpop.permute.xlu0 %227
    %229 = vrot.lane.b32.xlu0 %v180, 112
    %v230 = vpop.permute.xlu0 %229
    %231 = vrot.lane.b32.xlu0 %v181, 112
    %v232 = vpop.permute.xlu0 %231
    %233 = vrot.lane.b32.xlu0 %v182, 112
    %v234 = vpop.permute.xlu0 %233
    %241 = vrot.lane.b32.xlu0 %v219, 112
    %v242 = vpop.permute.xlu0 %241
    %243 = vrot.lane.b32.xlu0 %v221, 112
    %v244 = vpop.permute.xlu0 %243
    %v247 = vmul.f32 %v179, %v179
    %v248 = vmul.f32 %v180, %v180
    %v249 = vmul.f32 %v181, %v181
    %v250 = vmul.f32 %v182, %v182
    %v251 = vmul.f32 %v228, %v228
    %v252 = vmul.f32 %v230, %v230
    %v253 = vmul.f32 %v232, %v232
    %v254 = vmul.f32 %v234, %v234
    %vm255 = vcmask 130048
    %v256 = vsel %vm255, %v247, 0.0
    %257 = vadd.xlane.f32.xlu0 %v256
    %v258 = vpop.xlane.xlu0 %257
    %v259 = vsel %vm255, %v248, 0.0
    %260 = vadd.xlane.f32.xlu0 %v259
    %v261 = vpop.xlane.xlu0 %260
    %v262 = vsel %vm255, %v249, 0.0
    %263 = vadd.xlane.f32.xlu0 %v262
    %v264 = vpop.xlane.xlu0 %263
    %v265 = vsel %vm255, %v250, 0.0
    %266 = vadd.xlane.f32.xlu0 %v265
    %v267 = vpop.xlane.xlu0 %266
    %v268 = vsel %vm255, %v251, 0.0
    %269 = vadd.xlane.f32.xlu0 %v268
    %v270 = vpop.xlane.xlu0 %269
    %v271 = vsel %vm255, %v252, 0.0
    %272 = vadd.xlane.f32.xlu0 %v271
    %v273 = vpop.xlane.xlu0 %272
    %v274 = vsel %vm255, %v253, 0.0
    %275 = vadd.xlane.f32.xlu0 %v274
    %v276 = vpop.xlane.xlu0 %275
    %v277 = vsel %vm255, %v254, 0.0
    %278 = vadd.xlane.f32.xlu0 %v277
    %v279 = vpop.xlane.xlu0 %278
    %v280 = vmax.f32 %v258, 1e-24
    %v281 = vmax.f32 %v261, 1e-24
    %v282 = vmax.f32 %v264, 1e-24
    %v283 = vmax.f32 %v267, 1e-24
    %v284 = vmax.f32 %v270, 1e-24
    %v285 = vmax.f32 %v273, 1e-24
    %v286 = vmax.f32 %v276, 1e-24
    %v287 = vmax.f32 %v279, 1e-24
    %v288 = vrsqrt.pop %v280
    %v289 = vmul.f32 %v288, %v280
    %v290 = vmul.f32 %v289, %v288
    %v291 = vmul.f32 0.5, %v290
    %v292 = vsub.f32 1.5, %v291
    %v293 = vmul.f32 %v288, %v292
    %vm294 = vweird.f32 %v280
    %vm295 = vweird.f32 %v288
    %vm296 = vmor %vm294, %vm295
    %v297 = vsel %vm296, %v288, %v293
    %v298 = vrsqrt.pop %v281
    %v299 = vmul.f32 %v298, %v281
    %v300 = vmul.f32 %v299, %v298
    %v301 = vmul.f32 0.5, %v300
    %v302 = vsub.f32 1.5, %v301
    %v303 = vmul.f32 %v298, %v302
    %vm304 = vweird.f32 %v281
    %vm305 = vweird.f32 %v298
    %vm306 = vmor %vm304, %vm305
    %v307 = vsel %vm306, %v298, %v303
    %v308 = vrsqrt.pop %v282
    %v309 = vmul.f32 %v308, %v282
    %v310 = vmul.f32 %v309, %v308
    %v311 = vmul.f32 0.5, %v310
    %v312 = vsub.f32 1.5, %v311
    %v313 = vmul.f32 %v308, %v312
    %vm314 = vweird.f32 %v282
    %vm315 = vweird.f32 %v308
    %vm316 = vmor %vm314, %vm315
    %v317 = vsel %vm316, %v308, %v313
    %v318 = vrsqrt.pop %v283
    %v319 = vmul.f32 %v318, %v283
    %v320 = vmul.f32 %v319, %v318
    %v321 = vmul.f32 0.5, %v320
    %v322 = vsub.f32 1.5, %v321
    %v323 = vmul.f32 %v318, %v322
    %vm324 = vweird.f32 %v283
    %vm325 = vweird.f32 %v318
    %vm326 = vmor %vm324, %vm325
    %v327 = vsel %vm326, %v318, %v323
    %v328 = vrsqrt.pop %v284
    %v329 = vmul.f32 %v328, %v284
    %v330 = vmul.f32 %v329, %v328
    %v331 = vmul.f32 0.5, %v330
    %v332 = vsub.f32 1.5, %v331
    %v333 = vmul.f32 %v328, %v332
    %vm334 = vweird.f32 %v284
    %vm335 = vweird.f32 %v328
    %vm336 = vmor %vm334, %vm335
    %v337 = vsel %vm336, %v328, %v333
    %v338 = vrsqrt.pop %v285
    %v339 = vmul.f32 %v338, %v285
    %v340 = vmul.f32 %v339, %v338
    %v341 = vmul.f32 0.5, %v340
    %v342 = vsub.f32 1.5, %v341
    %v343 = vmul.f32 %v338, %v342
    %vm344 = vweird.f32 %v285
    %vm345 = vweird.f32 %v338
    %vm346 = vmor %vm344, %vm345
    %v347 = vsel %vm346, %v338, %v343
    %v348 = vrsqrt.pop %v286
    %v349 = vmul.f32 %v348, %v286
    %v350 = vmul.f32 %v349, %v348
    %v351 = vmul.f32 0.5, %v350
    %v352 = vsub.f32 1.5, %v351
    %v353 = vmul.f32 %v348, %v352
    %vm354 = vweird.f32 %v286
    %vm355 = vweird.f32 %v348
    %vm356 = vmor %vm354, %vm355
    %v357 = vsel %vm356, %v348, %v353
    %v358 = vrsqrt.pop %v287
    %v359 = vmul.f32 %v358, %v287
    %v360 = vmul.f32 %v359, %v358
    %v361 = vmul.f32 0.5, %v360
    %v362 = vsub.f32 1.5, %v361
    %v363 = vmul.f32 %v358, %v362
    %vm364 = vweird.f32 %v287
    %vm365 = vweird.f32 %v358
    %vm366 = vmor %vm364, %vm365
    %v367 = vsel %vm366, %v358, %v363
    %v368 = vmul.f32 %v297, 0.17677669
    %v369 = vmul.f32 %v307, 0.17677669
    %v370 = vmul.f32 %v317, 0.17677669
    %v371 = vmul.f32 %v327, 0.17677669
    %v372 = vmul.f32 %v337, 0.17677669
    %v373 = vmul.f32 %v347, 0.17677669
    %v374 = vmul.f32 %v357, 0.17677669
    %v375 = vmul.f32 %v367, 0.17677669
    %v376 = vmul.f32 %v179, %v368
    %v377 = vmul.f32 %v180, %v369
    %v378 = vmul.f32 %v181, %v370
    %v379 = vmul.f32 %v182, %v371
    %v380 = vmul.f32 %v228, %v372
    %v381 = vmul.f32 %v230, %v373
    %v382 = vmul.f32 %v232, %v374
    %v383 = vmul.f32 %v234, %v375
    %v384 = vmul.f32 %v219, %v219
    %v385 = vmul.f32 %v221, %v221
    %v386 = vmul.f32 %v242, %v242
    %v387 = vmul.f32 %v244, %v244
    %v388 = vsel %vm255, %v384, 0.0
    %389 = vadd.xlane.f32.xlu0 %v388
    %v390 = vpop.xlane.xlu0 %389
    %v391 = vsel %vm255, %v385, 0.0
    %392 = vadd.xlane.f32.xlu0 %v391
    %v393 = vpop.xlane.xlu0 %392
    %v394 = vsel %vm255, %v386, 0.0
    %395 = vadd.xlane.f32.xlu0 %v394
    %v396 = vpop.xlane.xlu0 %395
    %v397 = vsel %vm255, %v387, 0.0
    %398 = vadd.xlane.f32.xlu0 %v397
    %v399 = vpop.xlane.xlu0 %398
    %v400 = vmax.f32 %v390, 1e-24
    %v401 = vmax.f32 %v393, 1e-24
    %v402 = vmax.f32 %v396, 1e-24
    %v403 = vmax.f32 %v399, 1e-24
    %v404 = vrsqrt.pop %v400
    %v405 = vmul.f32 %v404, %v400
    %v406 = vmul.f32 %v405, %v404
    %v407 = vmul.f32 0.5, %v406
    %v408 = vsub.f32 1.5, %v407
    %v409 = vmul.f32 %v404, %v408
    %vm410 = vweird.f32 %v400
    %vm411 = vweird.f32 %v404
    %vm412 = vmor %vm410, %vm411
    %v413 = vsel %vm412, %v404, %v409
    %v414 = vrsqrt.pop %v401
    %v415 = vmul.f32 %v414, %v401
    %v416 = vmul.f32 %v415, %v414
    %v417 = vmul.f32 0.5, %v416
    %v418 = vsub.f32 1.5, %v417
    %v419 = vmul.f32 %v414, %v418
    %vm420 = vweird.f32 %v401
    %vm421 = vweird.f32 %v414
    %vm422 = vmor %vm420, %vm421
    %v423 = vsel %vm422, %v414, %v419
    %v424 = vrsqrt.pop %v402
    %v425 = vmul.f32 %v424, %v402
    %v426 = vmul.f32 %v425, %v424
    %v427 = vmul.f32 0.5, %v426
    %v428 = vsub.f32 1.5, %v427
    %v429 = vmul.f32 %v424, %v428
    %vm430 = vweird.f32 %v402
    %vm431 = vweird.f32 %v424
    %vm432 = vmor %vm430, %vm431
    %v433 = vsel %vm432, %v424, %v429
    %v434 = vrsqrt.pop %v403
    %v435 = vmul.f32 %v434, %v403
    %v436 = vmul.f32 %v435, %v434
    %v437 = vmul.f32 0.5, %v436
    %v438 = vsub.f32 1.5, %v437
    %v439 = vmul.f32 %v434, %v438
    %vm440 = vweird.f32 %v403
    %vm441 = vweird.f32 %v434
    %vm442 = vmor %vm440, %vm441
    %v443 = vsel %vm442, %v434, %v439
    %v444 = vmul.f32 %v219, %v413
    %v445 = vmul.f32 %v221, %v423
    %v446 = vmul.f32 %v242, %v433
    %v447 = vmul.f32 %v244, %v443
    %v448 = vpack.c.bf16 %v376, %v376
    %v449 = vpack.c.bf16 %v377, %v377
    %v450 = vpack.c.bf16 %v378, %v378
    %v451 = vpack.c.bf16 %v379, %v379
    %v452 = vpack.c.bf16 %v380, %v380
    %v453 = vpack.c.bf16 %v381, %v381
    %v454 = vpack.c.bf16 %v382, %v382
    %v455 = vpack.c.bf16 %v383, %v383
    %v456 = vpack.c.bf16 %v444, %v444
    %v457 = vpack.c.bf16 %v445, %v445
    %v458 = vpack.c.bf16 %v446, %v446
    %v459 = vpack.c.bf16 %v447, %v447
    %v461 = vsel %vm255, %v448, 0
    %v464 = vsel %vm255, %v456, 0
    %466 = vmatpush.bf16.xpose.msra.mxu0 0
    %467 = vmatpush.bf16.xpose.msra.mxu0 0
    %468 = vmatpush.bf16.xpose.msra.mxu0 0
    %469 = vmatpush.bf16.xpose.msra.mxu0 0
    %470 = vmatpush.bf16.xpose.msra.mxu0 0
    %471 = vmatpush.bf16.xpose.msra.mxu0 0
    %472 = vmatpush.bf16.xpose.msra.mxu0 0
    %473 = vmatpush.bf16.xpose.msra.mxu0 %v464
    %474 = vmatmul.bf16.gmra.mxu0 %v461
    %v475 = vpop.f32.mrf.mxu0
    %v476 = vadd.f32 0.0, %v475
    %v477 = vpop.f32.mrf.mxu0
    %478 = vdwg.mxu0
    %v480 = vsel %vm255, %v449, 0
    %v483 = vsel %vm255, %v457, 0
    %485 = vmatpush.bf16.xpose.msra.mxu0 0
    %486 = vmatpush.bf16.xpose.msra.mxu0 0
    %487 = vmatpush.bf16.xpose.msra.mxu0 0
    %488 = vmatpush.bf16.xpose.msra.mxu0 0
    %489 = vmatpush.bf16.xpose.msra.mxu0 0
    %490 = vmatpush.bf16.xpose.msra.mxu0 0
    %491 = vmatpush.bf16.xpose.msra.mxu0 0
    %492 = vmatpush.bf16.xpose.msra.mxu0 %v483
    %493 = vmatmul.bf16.gmra.mxu0 %v480
    %v494 = vpop.f32.mrf.mxu0
    %v495 = vadd.f32 0.0, %v494
    %v496 = vpop.f32.mrf.mxu0
    %497 = vdwg.mxu0
    %v499 = vsel %vm255, %v450, 0
    %501 = vmatpush.bf16.xpose.msra.mxu0 0
    %502 = vmatpush.bf16.xpose.msra.mxu0 0
    %503 = vmatpush.bf16.xpose.msra.mxu0 0
    %504 = vmatpush.bf16.xpose.msra.mxu0 0
    %505 = vmatpush.bf16.xpose.msra.mxu0 0
    %506 = vmatpush.bf16.xpose.msra.mxu0 0
    %507 = vmatpush.bf16.xpose.msra.mxu0 0
    %508 = vmatpush.bf16.xpose.msra.mxu0 %v464
    %509 = vmatmul.bf16.gmra.mxu0 %v499
    %v510 = vpop.f32.mrf.mxu0
    %v511 = vadd.f32 0.0, %v510
    %v512 = vpop.f32.mrf.mxu0
    %513 = vdwg.mxu0
    %v515 = vsel %vm255, %v451, 0
    %517 = vmatpush.bf16.xpose.msra.mxu0 0
    %518 = vmatpush.bf16.xpose.msra.mxu0 0
    %519 = vmatpush.bf16.xpose.msra.mxu0 0
    %520 = vmatpush.bf16.xpose.msra.mxu0 0
    %521 = vmatpush.bf16.xpose.msra.mxu0 0
    %522 = vmatpush.bf16.xpose.msra.mxu0 0
    %523 = vmatpush.bf16.xpose.msra.mxu0 0
    %524 = vmatpush.bf16.xpose.msra.mxu0 %v483
    %525 = vmatmul.bf16.gmra.mxu0 %v515
    %v526 = vpop.f32.mrf.mxu0
    %v527 = vadd.f32 0.0, %v526
    %v528 = vpop.f32.mrf.mxu0
    %529 = vdwg.mxu0
    %v531 = vsel %vm255, %v452, 0
    %v534 = vsel %vm255, %v458, 0
    %536 = vmatpush.bf16.xpose.msra.mxu0 0
    %537 = vmatpush.bf16.xpose.msra.mxu0 0
    %538 = vmatpush.bf16.xpose.msra.mxu0 0
    %539 = vmatpush.bf16.xpose.msra.mxu0 0
    %540 = vmatpush.bf16.xpose.msra.mxu0 0
    %541 = vmatpush.bf16.xpose.msra.mxu0 0
    %542 = vmatpush.bf16.xpose.msra.mxu0 0
    %543 = vmatpush.bf16.xpose.msra.mxu0 %v534
    %544 = vmatmul.bf16.gmra.mxu0 %v531
    %v545 = vpop.f32.mrf.mxu0
    %v546 = vadd.f32 0.0, %v545
    %v547 = vpop.f32.mrf.mxu0
    %548 = vdwg.mxu0
    %v550 = vsel %vm255, %v453, 0
    %v553 = vsel %vm255, %v459, 0
    %555 = vmatpush.bf16.xpose.msra.mxu0 0
    %556 = vmatpush.bf16.xpose.msra.mxu0 0
    %557 = vmatpush.bf16.xpose.msra.mxu0 0
    %558 = vmatpush.bf16.xpose.msra.mxu0 0
    %559 = vmatpush.bf16.xpose.msra.mxu0 0
    %560 = vmatpush.bf16.xpose.msra.mxu0 0
    %561 = vmatpush.bf16.xpose.msra.mxu0 0
    %562 = vmatpush.bf16.xpose.msra.mxu0 %v553
    %563 = vmatmul.bf16.gmra.mxu0 %v550
    %v564 = vpop.f32.mrf.mxu0
    %v565 = vadd.f32 0.0, %v564
    %v566 = vpop.f32.mrf.mxu0
    %567 = vdwg.mxu0
    %v569 = vsel %vm255, %v454, 0
    %571 = vmatpush.bf16.xpose.msra.mxu0 0
    %572 = vmatpush.bf16.xpose.msra.mxu0 0
    %573 = vmatpush.bf16.xpose.msra.mxu0 0
    %574 = vmatpush.bf16.xpose.msra.mxu0 0
    %575 = vmatpush.bf16.xpose.msra.mxu0 0
    %576 = vmatpush.bf16.xpose.msra.mxu0 0
    %577 = vmatpush.bf16.xpose.msra.mxu0 0
    %578 = vmatpush.bf16.xpose.msra.mxu0 %v534
    %579 = vmatmul.bf16.gmra.mxu0 %v569
    %v580 = vpop.f32.mrf.mxu0
    %v581 = vadd.f32 0.0, %v580
    %v582 = vpop.f32.mrf.mxu0
    %583 = vdwg.mxu0
    %v585 = vsel %vm255, %v455, 0
    %587 = vmatpush.bf16.xpose.msra.mxu0 0
    %588 = vmatpush.bf16.xpose.msra.mxu0 0
    %589 = vmatpush.bf16.xpose.msra.mxu0 0
    %590 = vmatpush.bf16.xpose.msra.mxu0 0
    %591 = vmatpush.bf16.xpose.msra.mxu0 0
    %592 = vmatpush.bf16.xpose.msra.mxu0 0
    %593 = vmatpush.bf16.xpose.msra.mxu0 0
    %594 = vmatpush.bf16.xpose.msra.mxu0 %v553
    %595 = vmatmul.bf16.gmra.mxu0 %v585
    %v596 = vpop.f32.mrf.mxu0
    %v597 = vadd.f32 0.0, %v596
    %v598 = vpop.f32.mrf.mxu0
    %599 = vdwg.mxu0
    %vm600 = vcmask 64512
    %v601 = vsel %vm600, %v476, -inf
    %602 = vmax.xlane.f32.xlu0 %v601
    %v603 = vpop.xlane.xlu0 %602
    %v604 = vsel %vm600, %v495, -inf
    %605 = vmax.xlane.f32.xlu0 %v604
    %v606 = vpop.xlane.xlu0 %605
    %v607 = vsel %vm600, %v511, -inf
    %608 = vmax.xlane.f32.xlu0 %v607
    %v609 = vpop.xlane.xlu0 %608
    %v610 = vsel %vm600, %v527, -inf
    %611 = vmax.xlane.f32.xlu0 %v610
    %v612 = vpop.xlane.xlu0 %611
    %v613 = vsel %vm600, %v546, -inf
    %614 = vmax.xlane.f32.xlu0 %v613
    %v615 = vpop.xlane.xlu0 %614
    %v616 = vsel %vm600, %v565, -inf
    %617 = vmax.xlane.f32.xlu0 %v616
    %v618 = vpop.xlane.xlu0 %617
    %v619 = vsel %vm600, %v581, -inf
    %620 = vmax.xlane.f32.xlu0 %v619
    %v621 = vpop.xlane.xlu0 %620
    %v622 = vsel %vm600, %v597, -inf
    %623 = vmax.xlane.f32.xlu0 %v622
    %v624 = vpop.xlane.xlu0 %623
    %v625 = vsub.f32 %v476, %v603
    %v626 = vsub.f32 %v495, %v606
    %v627 = vsub.f32 %v511, %v609
    %v628 = vsub.f32 %v527, %v612
    %v629 = vsub.f32 %v546, %v615
    %v630 = vsub.f32 %v565, %v618
    %v631 = vsub.f32 %v581, %v621
    %v632 = vsub.f32 %v597, %v624
    %v633 = vmul.f32 %v625, 1.442695
    %v634 = vpow.pop %v633
    %v635 = vmul.f32 %v626, 1.442695
    %v636 = vpow.pop %v635
    %v637 = vmul.f32 %v627, 1.442695
    %v638 = vpow.pop %v637
    %v639 = vmul.f32 %v628, 1.442695
    %v640 = vpow.pop %v639
    %v641 = vmul.f32 %v629, 1.442695
    %v642 = vpow.pop %v641
    %v643 = vmul.f32 %v630, 1.442695
    %v644 = vpow.pop %v643
    %v645 = vmul.f32 %v631, 1.442695
    %v646 = vpow.pop %v645
    %v647 = vmul.f32 %v632, 1.442695
    %v648 = vpow.pop %v647
    %v649 = vsel %vm600, %v634, 0.0
    %650 = vadd.xlane.f32.xlu0 %v649
    %v651 = vpop.xlane.xlu0 %650
    %v652 = vsel %vm600, %v636, 0.0
    %653 = vadd.xlane.f32.xlu0 %v652
    %v654 = vpop.xlane.xlu0 %653
    %v655 = vsel %vm600, %v638, 0.0
    %656 = vadd.xlane.f32.xlu0 %v655
    %v657 = vpop.xlane.xlu0 %656
    %v658 = vsel %vm600, %v640, 0.0
    %659 = vadd.xlane.f32.xlu0 %v658
    %v660 = vpop.xlane.xlu0 %659
    %v661 = vsel %vm600, %v642, 0.0
    %662 = vadd.xlane.f32.xlu0 %v661
    %v663 = vpop.xlane.xlu0 %662
    %v664 = vsel %vm600, %v644, 0.0
    %665 = vadd.xlane.f32.xlu0 %v664
    %v666 = vpop.xlane.xlu0 %665
    %v667 = vsel %vm600, %v646, 0.0
    %668 = vadd.xlane.f32.xlu0 %v667
    %v669 = vpop.xlane.xlu0 %668
    %v670 = vsel %vm600, %v648, 0.0
    %671 = vadd.xlane.f32.xlu0 %v670
    %v672 = vpop.xlane.xlu0 %671
    %v673 = vrcp.pop %v651
    %v674 = vrcp.pop %v654
    %v675 = vrcp.pop %v657
    %v676 = vrcp.pop %v660
    %v677 = vrcp.pop %v663
    %v678 = vrcp.pop %v666
    %v679 = vrcp.pop %v669
    %v680 = vrcp.pop %v672
    %v681 = vmul.f32 %v634, %v673
    %v682 = vmul.f32 %v636, %v674
    %v683 = vmul.f32 %v638, %v675
    %v684 = vmul.f32 %v640, %v676
    %v685 = vmul.f32 %v642, %v677
    %v686 = vmul.f32 %v644, %v678
    %v687 = vmul.f32 %v646, %v679
    %v688 = vmul.f32 %v648, %v680
    %v689 = vpack.c.bf16 %v681, %v681
    %v690 = vpack.c.bf16 %v682, %v682
    %v691 = vpack.c.bf16 %v683, %v683
    %v692 = vpack.c.bf16 %v684, %v684
    %v693 = vpack.c.bf16 %v685, %v685
    %v694 = vpack.c.bf16 %v686, %v686
    %v695 = vpack.c.bf16 %v687, %v687
    %v696 = vpack.c.bf16 %v688, %v688
    %v697 = vpack.c.bf16 %v219, %v219
    %v698 = vpack.c.bf16 %v221, %v221
    %v699 = vpack.c.bf16 %v242, %v242
    %v700 = vpack.c.bf16 %v244, %v244
    %v702 = vunpack.c.l.b16 %v697
    %v703 = vpack.c.b16 %v702, %v702
    %704 = vrot.lane.b32.xlu0 %v703, 96
    %v705 = vpop.permute.xlu0 %704
    %v707 = vsel %vm600, %v689, 0
    %vm709 = vcmask 1043456
    %v711 = vsel %vm709, %v705, 0
    %713 = vmatpush.bf16.msra.mxu0 0
    %714 = vmatpush.bf16.msra.mxu0 0
    %715 = vmatpush.bf16.msra.mxu0 0
    %716 = vmatpush.bf16.msra.mxu0 0
    %717 = vmatpush.bf16.msra.mxu0 0
    %718 = vmatpush.bf16.msra.mxu0 0
    %719 = vmatpush.bf16.msra.mxu0 0
    %720 = vmatpush.bf16.msra.mxu0 %v711
    %721 = vmatmul.bf16.gmra.mxu0 %v707
    %v722 = vpop.f32.mrf.mxu0
    %v723 = vadd.f32 0.0, %v722
    %v724 = vpop.f32.mrf.mxu0
    %725 = vdwg.mxu0
    %v727 = vunpack.c.l.b16 %v698
    %v728 = vpack.c.b16 %v727, %v727
    %729 = vrot.lane.b32.xlu0 %v728, 96
    %v730 = vpop.permute.xlu0 %729
    %v732 = vsel %vm600, %v690, 0
    %v735 = vsel %vm709, %v730, 0
    %737 = vmatpush.bf16.msra.mxu0 0
    %738 = vmatpush.bf16.msra.mxu0 0
    %739 = vmatpush.bf16.msra.mxu0 0
    %740 = vmatpush.bf16.msra.mxu0 0
    %741 = vmatpush.bf16.msra.mxu0 0
    %742 = vmatpush.bf16.msra.mxu0 0
    %743 = vmatpush.bf16.msra.mxu0 0
    %744 = vmatpush.bf16.msra.mxu0 %v735
    %745 = vmatmul.bf16.gmra.mxu0 %v732
    %v746 = vpop.f32.mrf.mxu0
    %v747 = vadd.f32 0.0, %v746
    %v748 = vpop.f32.mrf.mxu0
    %749 = vdwg.mxu0
    %v751 = vsel %vm600, %v691, 0
    %753 = vmatpush.bf16.msra.mxu0 0
    %754 = vmatpush.bf16.msra.mxu0 0
    %755 = vmatpush.bf16.msra.mxu0 0
    %756 = vmatpush.bf16.msra.mxu0 0
    %757 = vmatpush.bf16.msra.mxu0 0
    %758 = vmatpush.bf16.msra.mxu0 0
    %759 = vmatpush.bf16.msra.mxu0 0
    %760 = vmatpush.bf16.msra.mxu0 %v711
    %761 = vmatmul.bf16.gmra.mxu0 %v751
    %v762 = vpop.f32.mrf.mxu0
    %v763 = vadd.f32 0.0, %v762
    %v764 = vpop.f32.mrf.mxu0
    %765 = vdwg.mxu0
    %v767 = vsel %vm600, %v692, 0
    %769 = vmatpush.bf16.msra.mxu0 0
    %770 = vmatpush.bf16.msra.mxu0 0
    %771 = vmatpush.bf16.msra.mxu0 0
    %772 = vmatpush.bf16.msra.mxu0 0
    %773 = vmatpush.bf16.msra.mxu0 0
    %774 = vmatpush.bf16.msra.mxu0 0
    %775 = vmatpush.bf16.msra.mxu0 0
    %776 = vmatpush.bf16.msra.mxu0 %v735
    %777 = vmatmul.bf16.gmra.mxu0 %v767
    %v778 = vpop.f32.mrf.mxu0
    %v779 = vadd.f32 0.0, %v778
    %v780 = vpop.f32.mrf.mxu0
    %781 = vdwg.mxu0
    %v783 = vunpack.c.l.b16 %v699
    %v784 = vpack.c.b16 %v783, %v783
    %785 = vrot.lane.b32.xlu0 %v784, 96
    %v786 = vpop.permute.xlu0 %785
    %v788 = vsel %vm600, %v693, 0
    %v791 = vsel %vm709, %v786, 0
    %793 = vmatpush.bf16.msra.mxu0 0
    %794 = vmatpush.bf16.msra.mxu0 0
    %795 = vmatpush.bf16.msra.mxu0 0
    %796 = vmatpush.bf16.msra.mxu0 0
    %797 = vmatpush.bf16.msra.mxu0 0
    %798 = vmatpush.bf16.msra.mxu0 0
    %799 = vmatpush.bf16.msra.mxu0 0
    %800 = vmatpush.bf16.msra.mxu0 %v791
    %801 = vmatmul.bf16.gmra.mxu0 %v788
    %v802 = vpop.f32.mrf.mxu0
    %v803 = vadd.f32 0.0, %v802
    %v804 = vpop.f32.mrf.mxu0
    %805 = vdwg.mxu0
    %v807 = vunpack.c.l.b16 %v700
    %v808 = vpack.c.b16 %v807, %v807
    %809 = vrot.lane.b32.xlu0 %v808, 96
    %v810 = vpop.permute.xlu0 %809
    %v812 = vsel %vm600, %v694, 0
    %v815 = vsel %vm709, %v810, 0
    %817 = vmatpush.bf16.msra.mxu0 0
    %818 = vmatpush.bf16.msra.mxu0 0
    %819 = vmatpush.bf16.msra.mxu0 0
    %820 = vmatpush.bf16.msra.mxu0 0
    %821 = vmatpush.bf16.msra.mxu0 0
    %822 = vmatpush.bf16.msra.mxu0 0
    %823 = vmatpush.bf16.msra.mxu0 0
    %824 = vmatpush.bf16.msra.mxu0 %v815
    %825 = vmatmul.bf16.gmra.mxu0 %v812
    %v826 = vpop.f32.mrf.mxu0
    %v827 = vadd.f32 0.0, %v826
    %v828 = vpop.f32.mrf.mxu0
    %829 = vdwg.mxu0
    %v831 = vsel %vm600, %v695, 0
    %833 = vmatpush.bf16.msra.mxu0 0
    %834 = vmatpush.bf16.msra.mxu0 0
    %835 = vmatpush.bf16.msra.mxu0 0
    %836 = vmatpush.bf16.msra.mxu0 0
    %837 = vmatpush.bf16.msra.mxu0 0
    %838 = vmatpush.bf16.msra.mxu0 0
    %839 = vmatpush.bf16.msra.mxu0 0
    %840 = vmatpush.bf16.msra.mxu0 %v791
    %841 = vmatmul.bf16.gmra.mxu0 %v831
    %v842 = vpop.f32.mrf.mxu0
    %v843 = vadd.f32 0.0, %v842
    %v844 = vpop.f32.mrf.mxu0
    %845 = vdwg.mxu0
    %v847 = vsel %vm600, %v696, 0
    %849 = vmatpush.bf16.msra.mxu0 0
    %850 = vmatpush.bf16.msra.mxu0 0
    %851 = vmatpush.bf16.msra.mxu0 0
    %852 = vmatpush.bf16.msra.mxu0 0
    %853 = vmatpush.bf16.msra.mxu0 0
    %854 = vmatpush.bf16.msra.mxu0 0
    %855 = vmatpush.bf16.msra.mxu0 0
    %856 = vmatpush.bf16.msra.mxu0 %v815
    %857 = vmatmul.bf16.gmra.mxu0 %v847
    %v858 = vpop.f32.mrf.mxu0
    %v859 = vadd.f32 0.0, %v858
    %v860 = vpop.f32.mrf.mxu0
    %861 = vdwg.mxu0
    %866 = vrot.lane.b32.xlu0 %v803, 16
    %v867 = vpop.permute.xlu0 %866
    %868 = vrot.lane.b32.xlu0 %v827, 16
    %v869 = vpop.permute.xlu0 %868
    %870 = vrot.lane.b32.xlu0 %v843, 16
    %v871 = vpop.permute.xlu0 %870
    %872 = vrot.lane.b32.xlu0 %v859, 16
    %v873 = vpop.permute.xlu0 %872
    %v878 = vsel %vm255, %v723, %v867
    %v879 = vsel %vm255, %v747, %v869
    %v880 = vsel %vm255, %v763, %v871
    %v881 = vsel %vm255, %v779, %v873
    %v886 = vrot.slane %v879, 7
    %vm887 = vcmask 1041409
    %v888 = vsel %vm887, %v886, %v878
    %v889 = vrot.slane %v880, 6
    %vm890 = vcmask 1042434
    %v891 = vsel %vm890, %v889, %v888
    %v892 = vrot.slane %v881, 5
    %vm893 = vcmask 1043459
    %v894 = vsel %vm893, %v892, %v891
    %v896 = vrot.slane %v878, 1
    %v897 = vsel %vm887, %v879, %v896
    %v898 = vrot.slane %v880, 7
    %v899 = vsel %vm890, %v898, %v897
    %v900 = vrot.slane %v881, 6
    %v901 = vsel %vm893, %v900, %v899
    %902 = vrot.lane.b32.xlu0 %v901, 32
    %v903 = vpop.permute.xlu0 %902
    %v905 = vrot.slane %v878, 2
    %v906 = vrot.slane %v879, 1
    %v907 = vsel %vm887, %v906, %v905
    %v908 = vsel %vm890, %v880, %v907
    %v909 = vrot.slane %v881, 7
    %v910 = vsel %vm893, %v909, %v908
    %911 = vrot.lane.b32.xlu0 %v910, 64
    %v912 = vpop.permute.xlu0 %911
    %v914 = vrot.slane %v878, 3
    %v915 = vrot.slane %v879, 2
    %v916 = vsel %vm887, %v915, %v914
    %v917 = vrot.slane %v880, 1
    %v918 = vsel %vm890, %v917, %v916
    %v919 = vsel %vm893, %v881, %v918
    %920 = vrot.lane.b32.xlu0 %v919, 96
    %v921 = vpop.permute.xlu0 %920
    %v923 = vrot.slane %v878, 4
    %v924 = vrot.slane %v879, 3
    %v925 = vsel %vm887, %v924, %v923
    %v926 = vrot.slane %v880, 2
    %v927 = vsel %vm890, %v926, %v925
    %v928 = vrot.slane %v881, 1
    %v929 = vsel %vm893, %v928, %v927
    %v931 = vrot.slane %v878, 5
    %v932 = vrot.slane %v879, 4
    %v933 = vsel %vm887, %v932, %v931
    %v934 = vrot.slane %v880, 3
    %v935 = vsel %vm890, %v934, %v933
    %v936 = vrot.slane %v881, 2
    %v937 = vsel %vm893, %v936, %v935
    %938 = vrot.lane.b32.xlu0 %v937, 32
    %v939 = vpop.permute.xlu0 %938
    %v941 = vrot.slane %v878, 6
    %v942 = vrot.slane %v879, 5
    %v943 = vsel %vm887, %v942, %v941
    %v944 = vrot.slane %v880, 4
    %v945 = vsel %vm890, %v944, %v943
    %v946 = vrot.slane %v881, 3
    %v947 = vsel %vm893, %v946, %v945
    %948 = vrot.lane.b32.xlu0 %v947, 64
    %v949 = vpop.permute.xlu0 %948
    %v951 = vrot.slane %v878, 7
    %v952 = vrot.slane %v879, 6
    %v953 = vsel %vm887, %v952, %v951
    %v954 = vrot.slane %v880, 5
    %v955 = vsel %vm890, %v954, %v953
    %v956 = vrot.slane %v881, 4
    %v957 = vsel %vm893, %v956, %v955
    %958 = vrot.lane.b32.xlu0 %v957, 96
    %v959 = vpop.permute.xlu0 %958
    %v961 = vsel %vm152, %v894, %v903
    %vm962 = vcmask 523264
    %v963 = vsel %vm962, %v961, %v912
    %vm964 = vcmask 785408
    %v965 = vsel %vm964, %v963, %v921
    %v966 = vsel %vm152, %v929, %v939
    %v967 = vsel %vm962, %v966, %v949
    %v968 = vsel %vm964, %v967, %v959
    %v969 = vpack.c.bf16 %v965, %v965
    %v970 = vpack.c.bf16 %v968, %v968
    %v971 = vld [vmem:[#allocation11] sm:$0xff]
    %v972 = vld [vmem:[#allocation11 + $0x8] sm:$0xff]
    %v973 = vld [vmem:[#allocation11 + $0x10] sm:$0xff]
    %v974 = vld [vmem:[#allocation11 + $0x18] sm:$0xff]
    %v975 = vld [vmem:[#allocation11 + $0x20] sm:$0xff]
    %v976 = vld [vmem:[#allocation11 + $0x28] sm:$0xff]
    %v977 = vld [vmem:[#allocation11 + $0x30] sm:$0xff]
    %v978 = vld [vmem:[#allocation11 + $0x38] sm:$0xff]
    %v979 = vld [vmem:[#allocation11 + $0x40] sm:$0xff]
    %v980 = vld [vmem:[#allocation11 + $0x48] sm:$0xff]
    %v981 = vld [vmem:[#allocation11 + $0x50] sm:$0xff]
    %v982 = vld [vmem:[#allocation11 + $0x58] sm:$0xff]
    %v983 = vld [vmem:[#allocation11 + $0x60] sm:$0xff]
    %v984 = vld [vmem:[#allocation11 + $0x68] sm:$0xff]
    %v985 = vld [vmem:[#allocation11 + $0x70] sm:$0xff]
    %v986 = vld [vmem:[#allocation11 + $0x78] sm:$0xff]
    %v987 = vld [vmem:[#allocation11 + $0x80] sm:$0xff]
    %v988 = vld [vmem:[#allocation11 + $0x88] sm:$0xff]
    %v989 = vld [vmem:[#allocation11 + $0x90] sm:$0xff]
    %v990 = vld [vmem:[#allocation11 + $0x98] sm:$0xff]
    %v991 = vld [vmem:[#allocation11 + $0xa0] sm:$0xff]
    %v992 = vld [vmem:[#allocation11 + $0xa8] sm:$0xff]
    %v993 = vld [vmem:[#allocation11 + $0xb0] sm:$0xff]
    %v994 = vld [vmem:[#allocation11 + $0xb8] sm:$0xff]
    %v995 = vld [vmem:[#allocation11 + $0xc0] sm:$0xff]
    %v996 = vld [vmem:[#allocation11 + $0xc8] sm:$0xff]
    %v997 = vld [vmem:[#allocation11 + $0xd0] sm:$0xff]
    %v998 = vld [vmem:[#allocation11 + $0xd8] sm:$0xff]
    %v999 = vld [vmem:[#allocation11 + $0xe0] sm:$0xff]
    %v1000 = vld [vmem:[#allocation11 + $0xe8] sm:$0xff]
    %v1001 = vld [vmem:[#allocation11 + $0xf0] sm:$0xff]
    %v1002 = vld [vmem:[#allocation11 + $0xf8] sm:$0xff]
    %v1003 = vld [vmem:[%s7] sm:$0x3]
    %v1005 = vperm.slane %v1003, 0
    %v1006 = vperm.slane %v1003, 1
    %v1041 = vunpack.c.l.b16 %v971
    %v1042 = vunpack.c.h.b16 %v971
    %v1043 = vunpack.c.l.b16 %v972
    %v1044 = vunpack.c.h.b16 %v972
    %v1045 = vunpack.c.l.b16 %v973
    %v1046 = vunpack.c.h.b16 %v973
    %v1047 = vunpack.c.l.b16 %v974
    %v1048 = vunpack.c.h.b16 %v974
    %v1049 = vunpack.c.l.b16 %v975
    %v1050 = vunpack.c.h.b16 %v975
    %v1051 = vunpack.c.l.b16 %v976
    %v1052 = vunpack.c.h.b16 %v976
    %v1053 = vunpack.c.l.b16 %v977
    %v1054 = vunpack.c.h.b16 %v977
    %v1055 = vunpack.c.l.b16 %v978
    %v1056 = vunpack.c.h.b16 %v978
    %v1057 = vunpack.c.l.b16 %v979
    %v1058 = vunpack.c.h.b16 %v979
    %v1059 = vunpack.c.l.b16 %v980
    %v1060 = vunpack.c.h.b16 %v980
    %v1061 = vunpack.c.l.b16 %v981
    %v1062 = vunpack.c.h.b16 %v981
    %v1063 = vunpack.c.l.b16 %v982
    %v1064 = vunpack.c.h.b16 %v982
    %v1065 = vunpack.c.l.b16 %v983
    %v1066 = vunpack.c.h.b16 %v983
    %v1067 = vunpack.c.l.b16 %v984
    %v1068 = vunpack.c.h.b16 %v984
    %v1069 = vunpack.c.l.b16 %v985
    %v1070 = vunpack.c.h.b16 %v985
    %v1071 = vunpack.c.l.b16 %v986
    %v1072 = vunpack.c.h.b16 %v986
    %v1073 = vunpack.c.l.b16 %v987
    %v1074 = vunpack.c.h.b16 %v987
    %v1075 = vunpack.c.l.b16 %v988
    %v1076 = vunpack.c.h.b16 %v988
    %v1077 = vunpack.c.l.b16 %v989
    %v1078 = vunpack.c.h.b16 %v989
    %v1079 = vunpack.c.l.b16 %v990
    %v1080 = vunpack.c.h.b16 %v990
    %v1081 = vunpack.c.l.b16 %v991
    %v1082 = vunpack.c.h.b16 %v991
    %v1083 = vunpack.c.l.b16 %v992
    %v1084 = vunpack.c.h.b16 %v992
    %v1085 = vunpack.c.l.b16 %v993
    %v1086 = vunpack.c.h.b16 %v993
    %v1087 = vunpack.c.l.b16 %v994
    %v1088 = vunpack.c.h.b16 %v994
    %v1089 = vunpack.c.l.b16 %v995
    %v1090 = vunpack.c.h.b16 %v995
    %v1091 = vunpack.c.l.b16 %v996
    %v1092 = vunpack.c.h.b16 %v996
    %v1093 = vunpack.c.l.b16 %v997
    %v1094 = vunpack.c.h.b16 %v997
    %v1095 = vunpack.c.l.b16 %v998
    %v1096 = vunpack.c.h.b16 %v998
    %v1097 = vunpack.c.l.b16 %v999
    %v1098 = vunpack.c.h.b16 %v999
    %v1099 = vunpack.c.l.b16 %v1000
    %v1100 = vunpack.c.h.b16 %v1000
    %v1101 = vunpack.c.l.b16 %v1001
    %v1102 = vunpack.c.h.b16 %v1001
    %v1103 = vunpack.c.l.b16 %v1002
    %v1104 = vunpack.c.h.b16 %v1002
    %v1105 = vpack.c.b16 %v1043, %v1041
    %v1106 = vpack.c.b16 %v1044, %v1042
    %v1107 = vpack.c.b16 %v1047, %v1045
    %v1108 = vpack.c.b16 %v1048, %v1046
    %v1109 = vpack.c.b16 %v1051, %v1049
    %v1110 = vpack.c.b16 %v1052, %v1050
    %v1111 = vpack.c.b16 %v1055, %v1053
    %v1112 = vpack.c.b16 %v1056, %v1054
    %v1113 = vpack.c.b16 %v1059, %v1057
    %v1114 = vpack.c.b16 %v1060, %v1058
    %v1115 = vpack.c.b16 %v1063, %v1061
    %v1116 = vpack.c.b16 %v1064, %v1062
    %v1117 = vpack.c.b16 %v1067, %v1065
    %v1118 = vpack.c.b16 %v1068, %v1066
    %v1119 = vpack.c.b16 %v1071, %v1069
    %v1120 = vpack.c.b16 %v1072, %v1070
    %v1121 = vpack.c.b16 %v1075, %v1073
    %v1122 = vpack.c.b16 %v1076, %v1074
    %v1123 = vpack.c.b16 %v1079, %v1077
    %v1124 = vpack.c.b16 %v1080, %v1078
    %v1125 = vpack.c.b16 %v1083, %v1081
    %v1126 = vpack.c.b16 %v1084, %v1082
    %v1127 = vpack.c.b16 %v1087, %v1085
    %v1128 = vpack.c.b16 %v1088, %v1086
    %v1129 = vpack.c.b16 %v1091, %v1089
    %v1130 = vpack.c.b16 %v1092, %v1090
    %v1131 = vpack.c.b16 %v1095, %v1093
    %v1132 = vpack.c.b16 %v1096, %v1094
    %v1133 = vpack.c.b16 %v1099, %v1097
    %v1134 = vpack.c.b16 %v1100, %v1098
    %v1135 = vpack.c.b16 %v1103, %v1101
    %v1136 = vpack.c.b16 %v1104, %v1102
    %1169 = vmatpush.bf16.msra.mxu0 %v1119
    %1170 = vmatpush.bf16.msra.mxu0 %v1117
    %1171 = vmatpush.bf16.msra.mxu0 %v1115
    %1172 = vmatpush.bf16.msra.mxu0 %v1113
    %1173 = vmatpush.bf16.msra.mxu0 %v1111
    %1174 = vmatpush.bf16.msra.mxu0 %v1109
    %1175 = vmatpush.bf16.msra.mxu0 %v1107
    %1176 = vmatpush.bf16.msra.mxu0 %v1105
    %1177 = vmatmul.bf16.gmra.mxu0 %v969
    %v1178 = vpop.f32.mrf.mxu0
    %v1179 = vadd.f32 %v1005, %v1178
    %v1180 = vpop.f32.mrf.mxu0
    %1181 = vdwg.mxu0
    %1182 = vmatpush.bf16.msra.mxu0 %v1135
    %1183 = vmatpush.bf16.msra.mxu0 %v1133
    %1184 = vmatpush.bf16.msra.mxu0 %v1131
    %1185 = vmatpush.bf16.msra.mxu0 %v1129
    %1186 = vmatpush.bf16.msra.mxu0 %v1127
    %1187 = vmatpush.bf16.msra.mxu0 %v1125
    %1188 = vmatpush.bf16.msra.mxu0 %v1123
    %1189 = vmatpush.bf16.msra.mxu0 %v1121
    %1190 = vmatmul.bf16.gmra.mxu0 %v970
    %v1191 = vpop.f32.mrf.mxu0
    %v1192 = vadd.f32 %v1179, %v1191
    %v1193 = vpop.f32.mrf.mxu0
    %1194 = vdwg.mxu0
    %1195 = vmatpush.bf16.msra.mxu0 %v1120
    %1196 = vmatpush.bf16.msra.mxu0 %v1118
    %1197 = vmatpush.bf16.msra.mxu0 %v1116
    %1198 = vmatpush.bf16.msra.mxu0 %v1114
    %1199 = vmatpush.bf16.msra.mxu0 %v1112
    %1200 = vmatpush.bf16.msra.mxu0 %v1110
    %1201 = vmatpush.bf16.msra.mxu0 %v1108
    %1202 = vmatpush.bf16.msra.mxu0 %v1106
    %1203 = vmatmul.bf16.gmra.mxu0 %v969
    %v1204 = vpop.f32.mrf.mxu0
    %v1205 = vadd.f32 %v1006, %v1204
    %v1206 = vpop.f32.mrf.mxu0
    %1207 = vdwg.mxu0
    %1208 = vmatpush.bf16.msra.mxu0 %v1136
    %1209 = vmatpush.bf16.msra.mxu0 %v1134
    %1210 = vmatpush.bf16.msra.mxu0 %v1132
    %1211 = vmatpush.bf16.msra.mxu0 %v1130
    %1212 = vmatpush.bf16.msra.mxu0 %v1128
    %1213 = vmatpush.bf16.msra.mxu0 %v1126
    %1214 = vmatpush.bf16.msra.mxu0 %v1124
    %1215 = vmatpush.bf16.msra.mxu0 %v1122
    %1216 = vmatmul.bf16.gmra.mxu0 %v970
    %v1217 = vpop.f32.mrf.mxu0
    %v1218 = vadd.f32 %v1205, %v1217
    %v1219 = vpop.f32.mrf.mxu0
    %1220 = vdwg.mxu0
    %v1223 = vrot.slane %v1218, 4
    %v1224 = vsel %vm709, %v1192, %v1223
    %1226 = vst [vmem:[#allocation13] sm:$0xff] %v1224
    // Predicated region
    $region58: #{tpu_custom_call.1} parent=1 // pred_check
      _
    $region59: #{tpu_custom_call.1} parent=1 // pred_check_branch
      %1228 = sbr.rel (0) target = $region61
    $region60: #{tpu_custom_call.1} parent=1 // pred_region
      %s1229 = sadd.s32 0, 0
      %1231 = vsyncadd [#allocation4], 0
      %s1232 = smul.addr %s1229, 2
      %s1233 = smul.addr %s1232, 4
      %s1234 = scalar_lea.hbm %s8, %s1233
      %s1236 = sshll.u32 [#allocation13], 4
      %s1237 = int_to_ptr.vmem [resolvable:$true] %s1236
      %s1238 = sshll.u32 %s1234, 4
      %s1239 = int_to_ptr.hbm [resolvable:$true] %s1238
      %1241 = dma.vmem_to_hbm [thread:$0]  %s1237, 128, %s1239, [#allocation4]
    $region61: #{tpu_custom_call.1} parent=1 // pred_fallthru
      _
    // Predicated region
    $region62: #{tpu_custom_call.1} parent=1 // pred_check
      _
    $region63: #{tpu_custom_call.1} parent=1 // pred_check_branch
      %1243 = sbr.rel (0) target = $region65
    $region64: #{tpu_custom_call.1} parent=1 // pred_region
      %1245 = dma.done [#allocation4], 128
    $region65: #{tpu_custom_call.1} parent=1 // pred_fallthru
      _
    %1246 = vsyncpa [#allocation3], 1
    %1247 = vsyncpa [#allocation6], 1
    %1248 = vsyncpa [#allocation9], 1
    %1249 = vsyncpa [#allocation12], 1
    %1250 = vsyncpa [#allocation4], 1

</llo_original>
